<compile_context>
chip_gen: v7x
topology: tpu7x:2x2x1
jax: 0.10.0
libtpu: 0.0.40
codegen_flags: <defaults>
</compile_context>

<pallas_src>
import jax
import jax.numpy as jnp
from jax.experimental import pallas as pl
from jax.experimental.pallas import tpu as pltpu


def _round_up(n, m):
    return (n + m - 1) // m * m


# ----------------------------------------------------------------------------
# Kernels: one fused VPU pass per direction, lane-dense on the time axis.
# ----------------------------------------------------------------------------
def _ea_fwd_kernel(x_ref, mask_ref, m_ref, logs_ref, y_ref):
    # x_ref: (1, C, Tt)   mask_ref: (1, 1, Tt)   m_ref/logs_ref: (C, 1)
    x = x_ref[0]                          # (C, Tt)
    mask = mask_ref[0]                    # (1, Tt) -> broadcast over channels
    y = (m_ref[...] + jnp.exp(logs_ref[...]) * x) * mask
    y_ref[0] = y.astype(y_ref.dtype)


def _ea_rev_kernel(x_ref, mask_ref, m_ref, logs_ref, o_ref):
    x = x_ref[0]                          # (C, Tt)
    mask = mask_ref[0]                    # (1, Tt)
    o = (x - m_ref[...]) * jnp.exp(-logs_ref[...]) * mask
    o_ref[0] = o.astype(o_ref.dtype)


# ----------------------------------------------------------------------------
# Wrapper
# ----------------------------------------------------------------------------
def elementwise_affine(x, x_mask, m, logs, reverse=False):
    """x: (B, C, T); x_mask: (B, 1, T); m, logs: (C, 1)."""
    B, C, T = x.shape
    assert x_mask.shape == (B, 1, T)
    assert m.shape == (C, 1) and logs.shape == (C, 1)

    # Lane-dense tiling of T: multiples of 128, large enough to amortize the
    # per-step pipeline overhead, clamped so the double-buffered working set
    # (x + y blocks + mask block, f32) stays well under v5e's ~16 MiB scoped
    # VMEM default (which also keeps it safe on v7x's 64 MiB physical VMEM).
    t_tile = min(_round_up(T, 128), 2048)
    bytes_per_lane = 16 * C + 8            # 2(dbuf) * (x + y) * 4B + mask
    max_lanes = (8 * 1024 * 1024) // max(bytes_per_lane, 1)
    t_tile = max(128, min(t_tile, max(128, (max_lanes // 128) * 128)))
    n_t = pl.cdiv(T, t_tile)

    in_specs = [
        pl.BlockSpec((1, C, t_tile), lambda b, t: (b, 0, t)),
        pl.BlockSpec((1, 1, t_tile), lambda b, t: (b, 0, t)),
        pl.BlockSpec((C, 1), lambda b, t: (0, 0)),
        pl.BlockSpec((C, 1), lambda b, t: (0, 0)),
    ]
    out_spec = pl.BlockSpec((1, C, t_tile), lambda b, t: (b, 0, t))
    cparams = pltpu.CompilerParams(
        dimension_semantics=("parallel", "parallel"))

    kernel = _ea_rev_kernel if reverse else _ea_fwd_kernel
    out = pl.pallas_call(
        kernel,
        out_shape=jax.ShapeDtypeStruct((B, C, T), x.dtype),
        grid=(B, n_t),
        in_specs=in_specs,
        out_specs=out_spec,
        compiler_params=cparams,
    )(x, x_mask, m, logs)

    if reverse:
        return out

    # Analytic logdet: sum_{c,t} logs_c * mask_{b,1,t} = sum(logs) * sum_t mask.
    logdet = jnp.sum(logs).astype(jnp.float32) * jnp.sum(
        x_mask.astype(jnp.float32), axis=(1, 2))
    return out, logdet


# ----------------------------------------------------------------------------
# Pure-JAX reference (mirrors the PyTorch forward exactly)
# ----------------------------------------------------------------------------
def _reference(x, x_mask, m, logs, reverse=False):
    if not reverse:
        y = (m[None] + jnp.exp(logs)[None] * x) * x_mask
        logdet = jnp.sum(logs[None] * x_mask, axis=(1, 2))
        return y, logdet
    return (x - m[None]) * jnp.exp(-logs[None]) * x_mask


if __name__ == "__main__":
    key = jax.random.PRNGKey(0)
    k1, k2, k3 = jax.random.split(key, 3)

    # small shapes; T not a multiple of 128 to exercise the ragged-tile path
    B, C, T = 2, 4, 200
    x = jax.random.normal(k1, (B, C, T), dtype=jnp.float32)
    lengths = jnp.array([200, 137], dtype=jnp.int32)
    x_mask = (jnp.arange(T)[None, None, :]
              < lengths[:, None, None]).astype(jnp.float32)
    # torch init is zeros (y == x*mask, logdet == 0); use small random params
    # so the affine/logdet math is actually exercised
    m = 0.1 * jax.random.normal(k2, (C, 1), dtype=jnp.float32)
    logs = 0.1 * jax.random.normal(k3, (C, 1), dtype=jnp.float32)

    y, logdet = elementwise_affine(x, x_mask, m, logs, reverse=False)
    x_rec = elementwise_affine(y, x_mask, m, logs, reverse=True)
    jax.block_until_ready((y, logdet, x_rec))

    y_ref, logdet_ref = _reference(x, x_mask, m, logs, reverse=False)
    assert jnp.allclose(y, y_ref, atol=1e-5, rtol=1e-5)
    assert jnp.allclose(logdet, logdet_ref, atol=1e-4, rtol=1e-5)
    assert jnp.allclose(x_rec, x * x_mask, atol=1e-5, rtol=1e-5)

    print("KERNEL_OK")
</pallas_src>

<mosaic_0001>
module attributes {stable_mosaic.version = 11 : i64} {
  func.func @_ea_fwd_kernel(%arg0: i32, %arg1: i32, %arg2: memref<1x4x256xf32, #tpu.memory_space<vmem>>, %arg3: memref<1x1x256xf32, #tpu.memory_space<vmem>>, %arg4: memref<4x1xf32, #tpu.memory_space<vmem>>, %arg5: memref<4x1xf32, #tpu.memory_space<vmem>>, %arg6: memref<1x4x256xf32, #tpu.memory_space<vmem>>) attributes {dimension_semantics = [#tpu.dimension_semantics<parallel>, #tpu.dimension_semantics<parallel>], iteration_bounds = array<i64: 2, 1>, scalar_prefetch = 0 : i64, scratch_operands = 0 : i64, tpu.core_type = #tpu.core_type<tc>, window_params = [{transform_indices = @transform_0, window_bounds = array<i64: 1, 4, 256>}, {transform_indices = @transform_1, window_bounds = array<i64: 1, 1, 256>}, {pipeline_mode = #tpu.pipeline_mode<synchronous>, transform_indices = @transform_2, window_bounds = array<i64: 4, 1>}, {pipeline_mode = #tpu.pipeline_mode<synchronous>, transform_indices = @transform_3, window_bounds = array<i64: 4, 1>}, {transform_indices = @transform_4, window_bounds = array<i64: 1, 4, 256>}]} {
    %c0 = arith.constant 0 : index
    %c0_0 = arith.constant 0 : index
    %c0_1 = arith.constant 0 : index
    %0 = vector.load %arg2[%c0, %c0_0, %c0_1] : memref<1x4x256xf32, #tpu.memory_space<vmem>>, vector<1x4x256xf32>
    %1 = vector.shape_cast %0 : vector<1x4x256xf32> to vector<4x256xf32>
    %c0_2 = arith.constant 0 : index
    %c0_3 = arith.constant 0 : index
    %c0_4 = arith.constant 0 : index
    %2 = vector.load %arg3[%c0_2, %c0_3, %c0_4] : memref<1x1x256xf32, #tpu.memory_space<vmem>>, vector<1x1x256xf32>
    %3 = vector.shape_cast %2 : vector<1x1x256xf32> to vector<1x256xf32>
    %c0_5 = arith.constant 0 : index
    %c0_6 = arith.constant 0 : index
    %4 = vector.load %arg4[%c0_5, %c0_6] : memref<4x1xf32, #tpu.memory_space<vmem>>, vector<4x1xf32>
    %c0_7 = arith.constant 0 : index
    %c0_8 = arith.constant 0 : index
    %5 = vector.load %arg5[%c0_7, %c0_8] : memref<4x1xf32, #tpu.memory_space<vmem>>, vector<4x1xf32>
    %6 = math.exp %5 : vector<4x1xf32>
    %7 = vector.broadcast %6 : vector<4x1xf32> to vector<4x256xf32>
    %8 = arith.mulf %7, %1 : vector<4x256xf32>
    %9 = vector.broadcast %4 : vector<4x1xf32> to vector<4x256xf32>
    %10 = arith.addf %9, %8 : vector<4x256xf32>
    %11 = vector.broadcast %3 : vector<1x256xf32> to vector<4x256xf32>
    %12 = arith.mulf %10, %11 : vector<4x256xf32>
    %c0_9 = arith.constant 0 : index
    %c0_10 = arith.constant 0 : index
    %c0_11 = arith.constant 0 : index
    %13 = vector.load %arg6[%c0_9, %c0_10, %c0_11] : memref<1x4x256xf32, #tpu.memory_space<vmem>>, vector<1x4x256xf32>
    %14 = vector.shape_cast %13 : vector<1x4x256xf32> to vector<4x256xf32>
    %15 = vector.shape_cast %12 : vector<4x256xf32> to vector<1x4x256xf32>
    tpu.vector_store %arg6[%c0_9, %c0_10, %c0_11], %15 {strides = array<i32>} : memref<1x4x256xf32, #tpu.memory_space<vmem>>, vector<1x4x256xf32>,
    return
  }
  func.func @transform_0(%arg0: i32, %arg1: i32) -> (i32, i32, i32) {
    %c0_i32 = arith.constant 0 : i32
    %c0_i32_0 = arith.constant 0 : i32
    return %arg0, %c0_i32, %arg1 : i32, i32, i32
  }
  func.func @transform_1(%arg0: i32, %arg1: i32) -> (i32, i32, i32) {
    %c0_i32 = arith.constant 0 : i32
    %c0_i32_0 = arith.constant 0 : i32
    return %arg0, %c0_i32, %arg1 : i32, i32, i32
  }
  func.func @transform_2(%arg0: i32, %arg1: i32) -> (i32, i32) {
    %c0_i32 = arith.constant 0 : i32
    %c0_i32_0 = arith.constant 0 : i32
    %c0_i32_1 = arith.constant 0 : i32
    return %c0_i32, %c0_i32_0 : i32, i32
  }
  func.func @transform_3(%arg0: i32, %arg1: i32) -> (i32, i32) {
    %c0_i32 = arith.constant 0 : i32
    %c0_i32_0 = arith.constant 0 : i32
    %c0_i32_1 = arith.constant 0 : i32
    return %c0_i32, %c0_i32_0 : i32, i32
  }
  func.func @transform_4(%arg0: i32, %arg1: i32) -> (i32, i32, i32) {
    %c0_i32 = arith.constant 0 : i32
    %c0_i32_0 = arith.constant 0 : i32
    return %arg0, %c0_i32, %arg1 : i32, i32, i32
  }
}

</mosaic_0001>

<llo_original>
// kernel: tpu_custom_call.1
$region0: #{tpu_custom_call.1}
  #allocation0 [shape = 'u32[]', space=smem, size = 0x4, offset = 0x4, fixed_abs, tag = 'smem constant byte address 0x4 - core index']
  #allocation1 [shape = 'u32[144,128]{1,0:T(1,128)}', space=vmem, size = 0x12000, scoped, tag = 'internal scratch']
  %s0 = inlined_call_operand.hbm [shape: f32[2,4,200], index: 0, kind: input, shape index: {}]
  %s1 = inlined_call_operand.vmem [shape: f32[2,1,200], index: 1, kind: input, shape index: {}]
  %s2 = inlined_call_operand.vmem [shape: f32[4,1], index: 2, kind: input, shape index: {}]
  %s3 = inlined_call_operand.vmem [shape: f32[4,1], index: 3, kind: input, shape index: {}]
  %s4 = inlined_call_operand.hbm [shape: f32[2,4,200], index: 4, kind: output, shape index: {}]
  %s5 = sld [smem:[#allocation0]]
  $region53: #{tpu_custom_call.1} parent=0
    _
  %s7 = ssub.s32 1, %s5
  %s8 = scalar_select 0, %s7, %s5
  $region1: #{tpu_custom_call.1} parent=0
    #allocation2 [shape = 'u8[8192]{0}', space=vmem, size = 0x2000, scoped, tag = 'input window, operand 0']
    #allocation3 [shape = 's32[2]{0}', space=sflag, size = 0x8, scoped, tag = 'scoped memory for tpu_custom_call.1']
    #allocation4 [shape = 's32[2]{0}', space=sflag, size = 0x8, scoped, tag = 'scoped memory for tpu_custom_call.1']
    #allocation5 [shape = 'u8[8192]{0}', space=vmem, size = 0x2000, scoped, tag = 'output window, operand 0']
    %9 = vsyncpa [#allocation3], 0
    %s10 = scalar_lea.sflag [#allocation3], 1
    %11 = vsyncpa %s10, 0
    %12 = vsyncpa [#allocation4], 0
    %s13 = scalar_lea.sflag [#allocation4], 1
    %14 = vsyncpa %s13, 0
    loop: start=0, step=1, limit=4
    $region2: #{tpu_custom_call.1} parent=1 // loop_pre_header
      _
    $region3: #{tpu_custom_call.1} parent=1 // loop_header
      %s16 = sphi 0, %s20
      %p17 = scmp.ge.s32.totalorder %s16, 4
      %s23 = sphi 0, %s35
      %s24 = sphi 0, %s31
      %s25 = sphi 0, %s23
      %s26 = sphi 0, %s24
      %s27 = sphi 0, %s25
      %s28 = sphi 0, %s26
      %s40 = sphi 0, %s42
      %s43 = sphi 0, %s40
      %s44 = sphi 0, %s43
      %s60 = sphi 0, %s44
      %s68 = sphi 0, %s70
      %s71 = sphi 0, %s68
      %s72 = sphi 0, %s71
      %s88 = sphi 0, %s72
      %s92 = sphi 0, %s92
      %s94 = sphi 0, %s92
      %s95 = sphi 0, %s94
      %s109 = sphi 0, %s95
      %s113 = sphi 0, %s113
      %s115 = sphi 0, %s113
      %s116 = sphi 0, %s115
      %s130 = sphi 0, %s116
      %s138 = sphi 0, %s140
      %s141 = sphi 0, %s138
      %s142 = sphi 0, %s141
      %s158 = sphi 0, %s142
    $region4: #{tpu_custom_call.1} parent=1 // loop_header_branch
      %19 = sbr.rel (%p17) target = $region8
    $region5: #{tpu_custom_call.1} parent=1 // loop_body
      %s21 = ssub.s32 %s16, 1
      %s22 = ssub.s32 %s16, 2
      %s29 = sadd.s32 1, %s24
      %p30 = scmp.ge.s32.totalorder %s29, 1
      %s31 = scalar_select %p30, 0, %s29
      %s32 = sadd.s32 1, %s23
      %s33 = scalar_select %p30, %s32, %s23
      %p34 = scmp.ge.s32.totalorder %s33, 2
      %s35 = scalar_select %p34, 0, %s33
      %s36 = ssub.s32 %s23, %s35
      %s37 = ssub.s32 %s24, %s31
      %s38 = sor.u32 %s36, %s37
      %p39 = scmp.eq.s32.totalorder %s38, 0
      %s41 = sadd.s32 %s40, 1
      %s42 = scalar_select %p39, %s40, %s41
      %p45 = pneg %p39
      %p46 = scmp.eq.s32.totalorder %s16, 1
      %p47 = por %p45, %p46
      %p48 = scmp.ne.s32.totalorder %s40, %s43
      %p49 = scmp.eq.s32.totalorder %s16, 0
      %p50 = por %p48, %p49
      %p51 = scmp.ne.s32.totalorder %s40, %s43
      %p52 = scmp.eq.s32.totalorder %s21, 1
      %p53 = por %p51, %p52
      %p54 = scmp.ne.s32.totalorder %s43, %s44
      %p55 = scmp.eq.s32.totalorder %s21, 0
      %p56 = por %p54, %p55
      %p57 = scmp.ne.s32.totalorder %s43, %s44
      %p58 = scmp.eq.s32.totalorder %s22, 1
      %p59 = por %p57, %p58
      %p61 = scmp.ne.s32.totalorder %s44, %s60
      %p62 = scmp.eq.s32.totalorder %s22, 0
      %p63 = por %p61, %p62
      %s64 = ssub.s32 %s23, %s35
      %s65 = ssub.s32 %s24, %s31
      %s66 = sor.u32 %s64, %s65
      %p67 = scmp.eq.s32.totalorder %s66, 0
      %s69 = sadd.s32 %s68, 1
      %s70 = scalar_select %p67, %s68, %s69
      %p73 = pneg %p67
      %p74 = scmp.eq.s32.totalorder %s16, 1
      %p75 = por %p73, %p74
      %p76 = scmp.ne.s32.totalorder %s68, %s71
      %p77 = scmp.eq.s32.totalorder %s16, 0
      %p78 = por %p76, %p77
      %p79 = scmp.ne.s32.totalorder %s68, %s71
      %p80 = scmp.eq.s32.totalorder %s21, 1
      %p81 = por %p79, %p80
      %p82 = scmp.ne.s32.totalorder %s71, %s72
      %p83 = scmp.eq.s32.totalorder %s21, 0
      %p84 = por %p82, %p83
      %p85 = scmp.ne.s32.totalorder %s71, %s72
      %p86 = scmp.eq.s32.totalorder %s22, 1
      %p87 = por %p85, %p86
      %p89 = scmp.ne.s32.totalorder %s72, %s88
      %p90 = scmp.eq.s32.totalorder %s22, 0
      %p91 = por %p89, %p90
      %s93 = sadd.s32 %s92, 1
      %p96 = scmp.eq.s32.totalorder %s16, 1
      %p97 = scmp.ne.s32.totalorder %s92, %s94
      %p98 = scmp.eq.s32.totalorder %s16, 0
      %p99 = por %p97, %p98
      %p100 = scmp.ne.s32.totalorder %s92, %s94
      %p101 = scmp.eq.s32.totalorder %s21, 1
      %p102 = por %p100, %p101
      %p103 = scmp.ne.s32.totalorder %s94, %s95
      %p104 = scmp.eq.s32.totalorder %s21, 0
      %p105 = por %p103, %p104
      %p106 = scmp.ne.s32.totalorder %s94, %s95
      %p107 = scmp.eq.s32.totalorder %s22, 1
      %p108 = por %p106, %p107
      %p110 = scmp.ne.s32.totalorder %s95, %s109
      %p111 = scmp.eq.s32.totalorder %s22, 0
      %p112 = por %p110, %p111
      %s114 = sadd.s32 %s113, 1
      %p117 = scmp.eq.s32.totalorder %s16, 1
      %p118 = scmp.ne.s32.totalorder %s113, %s115
      %p119 = scmp.eq.s32.totalorder %s16, 0
      %p120 = por %p118, %p119
      %p121 = scmp.ne.s32.totalorder %s113, %s115
      %p122 = scmp.eq.s32.totalorder %s21, 1
      %p123 = por %p121, %p122
      %p124 = scmp.ne.s32.totalorder %s115, %s116
      %p125 = scmp.eq.s32.totalorder %s21, 0
      %p126 = por %p124, %p125
      %p127 = scmp.ne.s32.totalorder %s115, %s116
      %p128 = scmp.eq.s32.totalorder %s22, 1
      %p129 = por %p127, %p128
      %p131 = scmp.ne.s32.totalorder %s116, %s130
      %p132 = scmp.eq.s32.totalorder %s22, 0
      %p133 = por %p131, %p132
      %s134 = ssub.s32 %s23, %s35
      %s135 = ssub.s32 %s24, %s31
      %s136 = sor.u32 %s134, %s135
      %p137 = scmp.eq.s32.totalorder %s136, 0
      %s139 = sadd.s32 %s138, 1
      %s140 = scalar_select %p137, %s138, %s139
      %p143 = pneg %p137
      %p144 = scmp.eq.s32.totalorder %s16, 1
      %p145 = por %p143, %p144
      %p146 = scmp.ne.s32.totalorder %s138, %s141
      %p147 = scmp.eq.s32.totalorder %s16, 0
      %p148 = por %p146, %p147
      %p149 = scmp.ne.s32.totalorder %s138, %s141
      %p150 = scmp.eq.s32.totalorder %s21, 1
      %p151 = por %p149, %p150
      %p152 = scmp.ne.s32.totalorder %s141, %s142
      %p153 = scmp.eq.s32.totalorder %s21, 0
      %p154 = por %p152, %p153
      %p155 = scmp.ne.s32.totalorder %s141, %s142
      %p156 = scmp.eq.s32.totalorder %s22, 1
      %p157 = por %p155, %p156
      %p159 = scmp.ne.s32.totalorder %s142, %s158
      %p160 = scmp.eq.s32.totalorder %s22, 0
      %p161 = por %p159, %p160
      %p162 = scmp.le.s32.totalorder 1, %s16
      %p163 = scmp.lt.s32.totalorder %s16, 3
      %p164 = pnand %p162, %p163
      %p165 = pneg %p164
      // Predicated region
      $region9: #{tpu_custom_call.1} parent=5 // pred_check
        _
      $region10: #{tpu_custom_call.1} parent=5 // pred_check_branch
        %167 = sbr.rel (%p164) target = $region12
      $region11: #{tpu_custom_call.1} parent=5 // pred_region
        %s168 = ssub.s32 %s16, 1
        // Predicated region
        $region13: #{tpu_custom_call.1} parent=11 // pred_check
          %p169 = pneg %p105
        $region14: #{tpu_custom_call.1} parent=11 // pred_check_branch
          %171 = sbr.rel (%p169) target = $region16
        $region15: #{tpu_custom_call.1} parent=11 // pred_region
          _
        $region16: #{tpu_custom_call.1} parent=11 // pred_fallthru
          _
        // Predicated region
        $region17: #{tpu_custom_call.1} parent=11 // pred_check
          %p172 = pneg %p126
        $region18: #{tpu_custom_call.1} parent=11 // pred_check_branch
          %174 = sbr.rel (%p172) target = $region20
        $region19: #{tpu_custom_call.1} parent=11 // pred_region
          _
        $region20: #{tpu_custom_call.1} parent=11 // pred_fallthru
          _
      $region12: #{tpu_custom_call.1} parent=5 // pred_fallthru
        _
      %p175 = scmp.lt.s32.totalorder %s16, 2
      // Predicated region
      $region21: #{tpu_custom_call.1} parent=5 // pred_check
        %p176 = pneg %p175
      $region22: #{tpu_custom_call.1} parent=5 // pred_check_branch
        %178 = sbr.rel (%p176) target = $region24
      $region23: #{tpu_custom_call.1} parent=5 // pred_region
        // Predicated region
        $region25: #{tpu_custom_call.1} parent=23 // pred_check
          %p179 = pneg %p50
        $region26: #{tpu_custom_call.1} parent=23 // pred_check_branch
          %181 = sbr.rel (%p179) target = $region28
        $region27: #{tpu_custom_call.1} parent=23 // pred_region
          %s182 = sand.u32 %s40, 1
          %s183 = scalar_lea.sflag [#allocation3], %s182
          %s184 = sand.u32 %s40, 1
          %s185 = smul.addr %s184, 8
          %s186 = scalar_lea.vmem [#allocation2], %s185
          %s187 = smul.u32 2, %s24
          %s189 = ssub.s32 128, 128
          %190 = vsyncadd %s183, %s189
          %s191 = smul.addr %s23, 2
          %s192 = sadd.s32 %s187, %s191
          %s193 = smul.addr %s192, 64
          %s194 = scalar_lea.hbm %s0, %s193
          %s196 = sshll.u32 %s186, 4
          %s197 = int_to_ptr.vmem [resolvable:$true] %s196
          %199 = dma.hbm_to_vmem [thread:$0]  %s194, 128, %s197, %s183
        $region28: #{tpu_custom_call.1} parent=23 // pred_fallthru
          _
        // Predicated region
        $region29: #{tpu_custom_call.1} parent=23 // pred_check
          %p200 = pneg %p78
        $region30: #{tpu_custom_call.1} parent=23 // pred_check_branch
          %202 = sbr.rel (%p200) target = $region32
        $region31: #{tpu_custom_call.1} parent=23 // pred_region
          %s203 = smul.u32 2, %s24
          %p204 = scmp.lt.s32.totalorder %s23, 1
          %s205 = scalar_select %p204, %s23, 1
          %p206 = scmp.lt.s32.totalorder %s203, 1
          %s207 = scalar_select %p206, %s203, 1
          %s208 = smul.addr %s205, 2
          %s209 = sadd.s32 %s207, %s208
          %s210 = scalar_lea.vmem %s1, %s209
          %s211 = smul.u32 2, %s24
        $region32: #{tpu_custom_call.1} parent=23 // pred_fallthru
          _
      $region24: #{tpu_custom_call.1} parent=5 // pred_fallthru
        _
      %p212 = scmp.le.s32.totalorder 1, %s16
      %p213 = scmp.lt.s32.totalorder %s16, 3
      %p214 = pnand %p212, %p213
      %p215 = pneg %p214
      // Predicated region
      $region33: #{tpu_custom_call.1} parent=5 // pred_check
        _
      $region34: #{tpu_custom_call.1} parent=5 // pred_check_branch
        %217 = sbr.rel (%p214) target = $region36
      $region35: #{tpu_custom_call.1} parent=5 // pred_region
        %s218 = ssub.s32 %s16, 1
        %s219 = sand.u32 %s43, 1
        %s220 = scalar_lea.sflag [#allocation3], %s219
        %s221 = sand.u32 %s43, 1
        %s222 = smul.addr %s221, 8
        %s223 = scalar_lea.vmem [#allocation2], %s222
        // Predicated region
        $region37: #{tpu_custom_call.1} parent=35 // pred_check
          %p224 = pneg %p56
        $region38: #{tpu_custom_call.1} parent=35 // pred_check_branch
          %226 = sbr.rel (%p224) target = $region40
        $region39: #{tpu_custom_call.1} parent=35 // pred_region
          %227 = dma.done %s220, 128
        $region40: #{tpu_custom_call.1} parent=35 // pred_fallthru
          _
        %s228 = sand.u32 %s43, 1
        %s229 = scalar_lea.sflag [#allocation3], %s228
        %s230 = sand.u32 %s43, 1
        %s231 = smul.addr %s230, 8
        %s232 = scalar_lea.vmem [#allocation2], %s231
        %p233 = pneg %p56
        %p234 = pneg %p53
        %s235 = smul.u32 2, %s26
        %p236 = scmp.lt.s32.totalorder %s25, 1
        %s237 = scalar_select %p236, %s25, 1
        %p238 = scmp.lt.s32.totalorder %s235, 1
        %s239 = scalar_select %p238, %s235, 1
        %s240 = smul.addr %s237, 2
        %s241 = sadd.s32 %s239, %s240
        %s242 = scalar_lea.vmem %s1, %s241
        %p243 = pneg %p84
        %p244 = pneg %p81
        %p245 = pneg %p105
        %p246 = pneg %p102
        %p247 = pneg %p126
        %p248 = pneg %p123
        %p249 = pneg %p154
        %p250 = pneg %p151
        %s251 = sand.u32 %s141, 1
        %s252 = scalar_lea.sflag [#allocation4], %s251
        %s253 = sand.u32 %s141, 1
        %s254 = smul.addr %s253, 8
        %s255 = scalar_lea.vmem [#allocation5], %s254
        %s256 = smul.u32 2, %s26
        %s257 = smul.u32 2, %s26
        %p258 = scmp.lt.s32.totalorder %s25, 1
        %s259 = scalar_select %p258, %s25, 1
        %p260 = scmp.lt.s32.totalorder %s257, 1
        %s261 = scalar_select %p260, %s257, 1
        %s262 = smul.addr %s259, 2
        %s263 = sadd.s32 %s261, %s262
        %s264 = scalar_lea.vmem %s1, %s263
        %s265 = smul.u32 2, %s26
        %s266 = smul.u32 2, %s26
        %v267 = vld [vmem:[%s223] sm:$0xff]
        %v268 = vld [vmem:[%s264] sm:$0x3]
        %v269 = vld [vmem:[%s2] sm:$0xf]
        %v270 = vld [vmem:[%s3] sm:$0xf]
        %v271 = vmul.f32 %v270, 1.442695
        %v272 = vpow.pop %v271
        %274 = vset.pattern.permute.xlu0 0
        %275 = vperm.xlu0 %274, %v272
        %v276 = vpop.permute.xlu0 %275
        %v279 = vcombine.high %v267, %v267
        %v281 = vmul.f32 %v276, %v267
        %v282 = vmul.f32 %v276, %v279
        %284 = vset.pattern.permute.xlu0 0
        %285 = vperm.xlu0 %284, %v269
        %v286 = vpop.permute.xlu0 %285
        %v288 = vadd.f32 %v286, %v281
        %v289 = vadd.f32 %v286, %v282
        %v291 = vlaneseq
        %v292 = vshrl.u32 %v291, 7
        %v293 = vsub.s32 0, %v292
        %v294 = vrot.slane %v268, %v293
        %v295 = vlaneseq
        %v296 = vshrl.u32 %v295, 7
        %v297 = vsub.s32 1, %v296
        %v298 = vrot.slane %v268, %v297
        %v301 = vmul.f32 %v288, %v294
        %v302 = vmul.f32 %v289, %v298
        %v305 = vcombine.low %v301, %v302
        %307 = vst [vmem:[%s255] sm:$0xff] %v305
        %s308 = sand.u32 %s141, 1
        %s309 = scalar_lea.sflag [#allocation4], %s308
        %s310 = sand.u32 %s141, 1
        %s311 = smul.addr %s310, 8
        %s312 = scalar_lea.vmem [#allocation5], %s311
        // Predicated region
        $region41: #{tpu_custom_call.1} parent=35 // pred_check
          %p313 = pneg %p151
        $region42: #{tpu_custom_call.1} parent=35 // pred_check_branch
          %315 = sbr.rel (%p313) target = $region44
        $region43: #{tpu_custom_call.1} parent=35 // pred_region
          %s316 = smul.u32 2, %s26
          %s318 = ssub.s32 128, 128
          %319 = vsyncadd %s309, %s318
          %s320 = smul.addr %s25, 2
          %s321 = sadd.s32 %s316, %s320
          %s322 = smul.addr %s321, 64
          %s323 = scalar_lea.hbm %s4, %s322
          %s325 = sshll.u32 %s312, 4
          %s326 = int_to_ptr.vmem [resolvable:$true] %s325
          %328 = dma.vmem_to_hbm [thread:$0]  %s326, 128, %s323, %s309
        $region44: #{tpu_custom_call.1} parent=35 // pred_fallthru
          _
      $region36: #{tpu_custom_call.1} parent=5 // pred_fallthru
        _
      %p329 = scmp.le.s32.totalorder 2, %s16
      // Predicated region
      $region45: #{tpu_custom_call.1} parent=5 // pred_check
        %p330 = pneg %p329
      $region46: #{tpu_custom_call.1} parent=5 // pred_check_branch
        %332 = sbr.rel (%p330) target = $region48
      $region47: #{tpu_custom_call.1} parent=5 // pred_region
        %s333 = ssub.s32 %s16, 2
        // Predicated region
        $region49: #{tpu_custom_call.1} parent=47 // pred_check
          %p334 = pneg %p157
        $region50: #{tpu_custom_call.1} parent=47 // pred_check_branch
          %336 = sbr.rel (%p334) target = $region52
        $region51: #{tpu_custom_call.1} parent=47 // pred_region
          %s337 = sand.u32 %s142, 1
          %s338 = scalar_lea.sflag [#allocation4], %s337
          %s339 = sand.u32 %s142, 1
          %s340 = smul.addr %s339, 8
          %s341 = scalar_lea.vmem [#allocation5], %s340
          %342 = dma.done %s338, 128
        $region52: #{tpu_custom_call.1} parent=47 // pred_fallthru
          _
      $region48: #{tpu_custom_call.1} parent=5 // pred_fallthru
        _
    $region6: #{tpu_custom_call.1} parent=1 // loop_footer
      %s20 = sadd.s32 1, %s16
    $region7: #{tpu_custom_call.1} parent=1 // loop_footer_branch
      %15 = sbr.rel target = $region3
    $region8: #{tpu_custom_call.1} parent=1 // loop_exit
      _
    %343 = vsyncpa [#allocation3], 1
    %s344 = scalar_lea.sflag [#allocation3], 1
    %345 = vsyncpa %s344, 1
    %346 = vsyncpa [#allocation4], 1
    %s347 = scalar_lea.sflag [#allocation4], 1
    %348 = vsyncpa %s347, 1

</llo_original>
